<compile_context>
chip_gen: v5e
topology: v5e:2x2
jax: 0.10.0
libtpu: 0.0.40
codegen_flags: <defaults>
</compile_context>

<pallas_src>
import functools

import jax
import jax.numpy as jnp
from jax.experimental import pallas as pl
from jax.experimental.pallas import tpu as pltpu

LANES = 128
MAX_TILE_ROWS = 4096      # 2 MiB f32 per input block; 2 in x 2 buf = 8 MiB VMEM
MIN_GRID_STEPS = 4        # keep >= 4 grid steps so both v7x TCs stream HBM


def _stable_bce(x, t):
    # PyTorch's numerically-stable BCE-with-logits:
    #   max(x, 0) - x * t + log1p(exp(-|x|))
    return jnp.maximum(x, 0.0) - x * t + jnp.log1p(jnp.exp(-jnp.abs(x)))


def _bce_partial_kernel(x_ref, t_ref, p_ref, *, tile_rows, valid_rows, need_mask):
    """Per-tile stable BCE-with-logits, reduced to an (8, 128) partial sum."""
    x = x_ref[...].astype(jnp.float32)
    t = t_ref[...].astype(jnp.float32)
    per_elem = _stable_bce(x, t)
    if need_mask:
        # The last block runs past the array; Pallas leaves those rows
        # undefined, so zero them explicitly (~2 VPU ops per vreg, free
        # under the HBM stream).
        row_ids = (pl.program_id(0) * tile_rows
                   + jax.lax.broadcasted_iota(jnp.int32, per_elem.shape, 0))
        per_elem = jnp.where(row_ids < valid_rows, per_elem, 0.0)
    # (tile_rows, 128) -> (tile_rows//8, 8, 128) is (8,128)-tile aligned;
    # the reduction is pure VPU work hidden under the HBM stream.
    p_ref[...] = per_elem.reshape(tile_rows // 8, 8, LANES).sum(axis=0)


def bce_with_logits_loss(outputs, targets):
    """Mean-reduced BCEWithLogitsLoss computed in a Pallas TPU kernel."""
    assert outputs.shape == targets.shape
    total = outputs.size
    x_flat = outputs.reshape(-1)
    t_flat = targets.reshape(-1)

    rem = total % LANES
    main = total - rem
    rows = main // LANES

    # Sub-128-element remainder: tiny plain-JAX correction (negligible vs.
    # the streamed bulk); avoids padding/copying the full inputs in HBM.
    tail_sum = jnp.float32(0.0)
    if rem:
        tail_sum = jnp.sum(
            _stable_bce(x_flat[main:].astype(jnp.float32),
                        t_flat[main:].astype(jnp.float32)))

    if rows == 0:
        return tail_sum / jnp.float32(total)

    # Lane-dense (rows, 128) views of the aligned prefix — no jnp.pad copy.
    x2d = x_flat[:main].reshape(rows, LANES)
    t2d = t_flat[:main].reshape(rows, LANES)

    # Largest tile that still leaves >= MIN_GRID_STEPS grid steps.
    tile_rows = min(MAX_TILE_ROWS,
                    max(8, ((pl.cdiv(rows, MIN_GRID_STEPS) + 7) // 8) * 8))
    n_tiles = pl.cdiv(rows, tile_rows)
    need_mask = (rows % tile_rows) != 0

    kernel = functools.partial(_bce_partial_kernel, tile_rows=tile_rows,
                               valid_rows=rows, need_mask=need_mask)

    out_bytes = n_tiles * 8 * LANES * 4
    partials = pl.pallas_call(
        kernel,
        out_shape=jax.ShapeDtypeStruct((n_tiles * 8, LANES), jnp.float32),
        grid=(n_tiles,),
        in_specs=[
            pl.BlockSpec((tile_rows, LANES), lambda i: (i, 0)),
            pl.BlockSpec((tile_rows, LANES), lambda i: (i, 0)),
        ],
        out_specs=pl.BlockSpec((8, LANES), lambda i: (i, 0)),
        compiler_params=pltpu.CompilerParams(
            dimension_semantics=("parallel",)),
        cost_estimate=pl.CostEstimate(
            flops=7 * main,
            transcendentals=2 * main,
            bytes_accessed=main * (x2d.dtype.itemsize + t2d.dtype.itemsize)
                           + out_bytes),
    )(x2d, t2d)

    # Final tiny reduction + mean in the wrapper (negligible vs input traffic).
    return (jnp.sum(partials) + tail_sum) / jnp.float32(total)


def loss_forward(outputs, targets, label_embs):
    """Equivalent of Loss(use_geodesic=False, only_label=False).forward."""
    del label_embs  # unused on the default path, matching the PyTorch module
    return bce_with_logits_loss(outputs, targets)


if __name__ == "__main__":
    key = jax.random.PRNGKey(0)
    k1, k2, k3 = jax.random.split(key, 3)

    # NCHW inputs consistent with a conv-style multi-label head.
    B, C, H, W = 2, 4, 16, 16
    outputs = jax.random.normal(k1, (B, C, H, W), dtype=jnp.float32)
    # Targets are exact 0/1 so bf16 is lossless and halves that HBM stream;
    # the kernel widens to f32 internally.
    targets = (jax.random.uniform(k2, (B, C, H, W)) > 0.5).astype(jnp.bfloat16)
    # Poincare label embeddings (unused by the default forward path).
    label_embs = jax.random.normal(k3, (B, 5, 8), dtype=jnp.float32) * 0.1

    loss = loss_forward(outputs, targets, label_embs)
    loss = jax.block_until_ready(loss)

    # Sanity check against a plain-JAX reference of BCEWithLogitsLoss.
    x = outputs.astype(jnp.float32)
    t = targets.astype(jnp.float32)
    ref = jnp.mean(jnp.maximum(x, 0.0) - x * t + jnp.log1p(jnp.exp(-jnp.abs(x))))
    assert jnp.allclose(loss, ref, rtol=1e-5, atol=1e-5), (loss, ref)

    print("KERNEL_OK")
</pallas_src>

<mosaic_0001>
module attributes {stable_mosaic.version = 11 : i64} {
  func.func @_bce_partial_kernel(%arg0: i32, %arg1: memref<8x128xf32, #tpu.memory_space<vmem>>, %arg2: memref<8x128xbf16, #tpu.memory_space<vmem>>, %arg3: memref<8x128xf32, #tpu.memory_space<vmem>>) attributes {dimension_semantics = [#tpu.dimension_semantics<parallel>], iteration_bounds = array<i64: 2>, scalar_prefetch = 0 : i64, scratch_operands = 0 : i64, tpu.core_type = #tpu.core_type<tc>, window_params = [{transform_indices = @transform_0, window_bounds = array<i64: 8, 128>}, {transform_indices = @transform_1, window_bounds = array<i64: 8, 128>}, {transform_indices = @transform_2, window_bounds = array<i64: 8, 128>}]} {
    %c0 = arith.constant 0 : index
    %c0_0 = arith.constant 0 : index
    %0 = vector.load %arg1[%c0, %c0_0] : memref<8x128xf32, #tpu.memory_space<vmem>>, vector<8x128xf32>
    %c0_1 = arith.constant 0 : index
    %c0_2 = arith.constant 0 : index
    %1 = vector.load %arg2[%c0_1, %c0_2] : memref<8x128xbf16, #tpu.memory_space<vmem>>, vector<8x128xbf16>
    %2 = arith.extf %1 : vector<8x128xbf16> to vector<8x128xf32>
    %cst = arith.constant 0.000000e+00 : f32
    %3 = vector.broadcast %cst : f32 to vector<8x128xf32>
    %4 = arith.maximumf %0, %3 : vector<8x128xf32>
    %5 = arith.mulf %0, %2 : vector<8x128xf32>
    %6 = arith.subf %4, %5 : vector<8x128xf32>
    %7 = math.absf %0 : vector<8x128xf32>
    %cst_3 = arith.constant 0.000000e+00 : f32
    %8 = vector.broadcast %cst_3 : f32 to vector<8x128xf32>
    %9 = arith.subf %8, %7 : vector<8x128xf32>
    %10 = math.exp %9 : vector<8x128xf32>
    %11 = math.log1p %10 : vector<8x128xf32>
    %12 = arith.addf %6, %11 : vector<8x128xf32>
    %13 = vector.shape_cast %12 : vector<8x128xf32> to vector<1x8x128xf32>
    %cst_4 = arith.constant dense<0.000000e+00> : vector<8x128xf32>
    %14 = vector.multi_reduction <add>, %13, %cst_4 [0] : vector<1x8x128xf32> to vector<8x128xf32>
    %c0_5 = arith.constant 0 : index
    %c0_6 = arith.constant 0 : index
    %15 = vector.load %arg3[%c0_5, %c0_6] : memref<8x128xf32, #tpu.memory_space<vmem>>, vector<8x128xf32>
    tpu.vector_store %arg3[%c0_5, %c0_6], %14 {strides = array<i32>} : memref<8x128xf32, #tpu.memory_space<vmem>>, vector<8x128xf32>,
    return
  }
  func.func @transform_0(%arg0: i32) -> (i32, i32) {
    %c0_i32 = arith.constant 0 : i32
    %c0_i32_0 = arith.constant 0 : i32
    return %arg0, %c0_i32 : i32, i32
  }
  func.func @transform_1(%arg0: i32) -> (i32, i32) {
    %c0_i32 = arith.constant 0 : i32
    %c0_i32_0 = arith.constant 0 : i32
    return %arg0, %c0_i32 : i32, i32
  }
  func.func @transform_2(%arg0: i32) -> (i32, i32) {
    %c0_i32 = arith.constant 0 : i32
    %c0_i32_0 = arith.constant 0 : i32
    return %arg0, %c0_i32 : i32, i32
  }
}

</mosaic_0001>

<llo_original>
// kernel: tpu_custom_call.1
$region0: #{tpu_custom_call.1}
  #allocation0 [shape = 'u32[]', space=smem, size = 0x4, offset = 0x4, fixed_abs, tag = 'smem constant byte address 0x4 - core index']
  #allocation1 [shape = 'u32[72,128]{1,0:T(1,128)}', space=vmem, size = 0x9000, scoped, tag = 'internal scratch']
  %s0 = inlined_call_operand.hbm [shape: f32[16,128], index: 0, kind: input, shape index: {}]
  %s1 = inlined_call_operand.hbm [shape: bf16[16,128], index: 1, kind: input, shape index: {}]
  %s2 = inlined_call_operand.hbm [shape: f32[16,128], index: 2, kind: output, shape index: {}]
  %s3 = sld [smem:[#allocation0]]
  $region49: #{tpu_custom_call.1} parent=0
    _
  %s5 = ssub.s32 1, %s3
  %s6 = scalar_select 0, %s5, %s3
  $region1: #{tpu_custom_call.1} parent=0
    #allocation2 [shape = 'u8[8192]{0}', space=vmem, size = 0x2000, scoped, tag = 'input window, operand 0']
    #allocation3 [shape = 's32[2]{0}', space=sflag, size = 0x8, scoped, tag = 'scoped memory for tpu_custom_call.1']
    #allocation4 [shape = 's32[2]{0}', space=sflag, size = 0x8, scoped, tag = 'scoped memory for tpu_custom_call.1']
    #allocation5 [shape = 'u8[4096]{0}', space=vmem, size = 0x1000, scoped, tag = 'input window, operand 1']
    #allocation6 [shape = 's32[2]{0}', space=sflag, size = 0x8, scoped, tag = 'scoped memory for tpu_custom_call.1']
    #allocation7 [shape = 'u8[8192]{0}', space=vmem, size = 0x2000, scoped, tag = 'output window, operand 0']
    %7 = vsyncpa [#allocation3], 0
    %s8 = scalar_lea.sflag [#allocation3], 1
    %9 = vsyncpa %s8, 0
    %10 = vsyncpa [#allocation6], 0
    %s11 = scalar_lea.sflag [#allocation6], 1
    %12 = vsyncpa %s11, 0
    %13 = vsyncpa [#allocation4], 0
    %s14 = scalar_lea.sflag [#allocation4], 1
    %15 = vsyncpa %s14, 0
    loop: start=0, step=1, limit=4
    $region2: #{tpu_custom_call.1} parent=1 // loop_pre_header
      _
    $region3: #{tpu_custom_call.1} parent=1 // loop_header
      %s17 = sphi 0, %s21
      %p18 = scmp.ge.s32.totalorder %s17, 4
      %s27 = sphi 0, %s29
      %s30 = sphi 0, %s27
      %s31 = sphi 0, %s30
      %s47 = sphi 0, %s31
      %s53 = sphi 0, %s55
      %s56 = sphi 0, %s53
      %s57 = sphi 0, %s56
      %s73 = sphi 0, %s57
      %s79 = sphi 0, %s81
      %s82 = sphi 0, %s79
      %s83 = sphi 0, %s82
      %s99 = sphi 0, %s83
    $region4: #{tpu_custom_call.1} parent=1 // loop_header_branch
      %20 = sbr.rel (%p18) target = $region8
    $region5: #{tpu_custom_call.1} parent=1 // loop_body
      %s22 = ssub.s32 %s17, 1
      %s23 = ssub.s32 %s17, 2
      %s24 = sadd.s32 %s17, 1
      %s25 = ssub.s32 %s17, %s24
      %p26 = scmp.eq.s32.totalorder %s25, 0
      %s28 = sadd.s32 %s27, 1
      %s29 = scalar_select %p26, %s27, %s28
      %p32 = pneg %p26
      %p33 = scmp.eq.s32.totalorder %s17, 1
      %p34 = por %p32, %p33
      %p35 = scmp.ne.s32.totalorder %s27, %s30
      %p36 = scmp.eq.s32.totalorder %s17, 0
      %p37 = por %p35, %p36
      %p38 = scmp.ne.s32.totalorder %s27, %s30
      %p39 = scmp.eq.s32.totalorder %s22, 1
      %p40 = por %p38, %p39
      %p41 = scmp.ne.s32.totalorder %s30, %s31
      %p42 = scmp.eq.s32.totalorder %s22, 0
      %p43 = por %p41, %p42
      %p44 = scmp.ne.s32.totalorder %s30, %s31
      %p45 = scmp.eq.s32.totalorder %s23, 1
      %p46 = por %p44, %p45
      %p48 = scmp.ne.s32.totalorder %s31, %s47
      %p49 = scmp.eq.s32.totalorder %s23, 0
      %p50 = por %p48, %p49
      %s51 = ssub.s32 %s17, %s24
      %p52 = scmp.eq.s32.totalorder %s51, 0
      %s54 = sadd.s32 %s53, 1
      %s55 = scalar_select %p52, %s53, %s54
      %p58 = pneg %p52
      %p59 = scmp.eq.s32.totalorder %s17, 1
      %p60 = por %p58, %p59
      %p61 = scmp.ne.s32.totalorder %s53, %s56
      %p62 = scmp.eq.s32.totalorder %s17, 0
      %p63 = por %p61, %p62
      %p64 = scmp.ne.s32.totalorder %s53, %s56
      %p65 = scmp.eq.s32.totalorder %s22, 1
      %p66 = por %p64, %p65
      %p67 = scmp.ne.s32.totalorder %s56, %s57
      %p68 = scmp.eq.s32.totalorder %s22, 0
      %p69 = por %p67, %p68
      %p70 = scmp.ne.s32.totalorder %s56, %s57
      %p71 = scmp.eq.s32.totalorder %s23, 1
      %p72 = por %p70, %p71
      %p74 = scmp.ne.s32.totalorder %s57, %s73
      %p75 = scmp.eq.s32.totalorder %s23, 0
      %p76 = por %p74, %p75
      %s77 = ssub.s32 %s17, %s24
      %p78 = scmp.eq.s32.totalorder %s77, 0
      %s80 = sadd.s32 %s79, 1
      %s81 = scalar_select %p78, %s79, %s80
      %p84 = pneg %p78
      %p85 = scmp.eq.s32.totalorder %s17, 1
      %p86 = por %p84, %p85
      %p87 = scmp.ne.s32.totalorder %s79, %s82
      %p88 = scmp.eq.s32.totalorder %s17, 0
      %p89 = por %p87, %p88
      %p90 = scmp.ne.s32.totalorder %s79, %s82
      %p91 = scmp.eq.s32.totalorder %s22, 1
      %p92 = por %p90, %p91
      %p93 = scmp.ne.s32.totalorder %s82, %s83
      %p94 = scmp.eq.s32.totalorder %s22, 0
      %p95 = por %p93, %p94
      %p96 = scmp.ne.s32.totalorder %s82, %s83
      %p97 = scmp.eq.s32.totalorder %s23, 1
      %p98 = por %p96, %p97
      %p100 = scmp.ne.s32.totalorder %s83, %s99
      %p101 = scmp.eq.s32.totalorder %s23, 0
      %p102 = por %p100, %p101
      %p103 = scmp.le.s32.totalorder 1, %s17
      %p104 = scmp.lt.s32.totalorder %s17, 3
      %p105 = pnand %p103, %p104
      %p106 = pneg %p105
      // Predicated region
      $region9: #{tpu_custom_call.1} parent=5 // pred_check
        _
      $region10: #{tpu_custom_call.1} parent=5 // pred_check_branch
        %108 = sbr.rel (%p105) target = $region12
      $region11: #{tpu_custom_call.1} parent=5 // pred_region
        %s109 = ssub.s32 %s17, 1
      $region12: #{tpu_custom_call.1} parent=5 // pred_fallthru
        _
      %p110 = scmp.lt.s32.totalorder %s17, 2
      // Predicated region
      $region13: #{tpu_custom_call.1} parent=5 // pred_check
        %p111 = pneg %p110
      $region14: #{tpu_custom_call.1} parent=5 // pred_check_branch
        %113 = sbr.rel (%p111) target = $region16
      $region15: #{tpu_custom_call.1} parent=5 // pred_region
        // Predicated region
        $region17: #{tpu_custom_call.1} parent=15 // pred_check
          %p114 = pneg %p37
        $region18: #{tpu_custom_call.1} parent=15 // pred_check_branch
          %116 = sbr.rel (%p114) target = $region20
        $region19: #{tpu_custom_call.1} parent=15 // pred_region
          %s117 = sand.u32 %s27, 1
          %s118 = scalar_lea.sflag [#allocation3], %s117
          %s119 = sand.u32 %s27, 1
          %s120 = smul.addr %s119, 8
          %s121 = scalar_lea.vmem [#allocation2], %s120
          %123 = vsyncadd %s118, 0
          %s124 = smul.addr %s17, 8
          %s125 = scalar_lea.hbm %s0, %s124
          %s127 = sshll.u32 %s125, 4
          %s128 = int_to_ptr.hbm [resolvable:$true] %s127
          %s129 = sshll.u32 %s121, 4
          %s130 = int_to_ptr.vmem [resolvable:$true] %s129
          %132 = dma.hbm_to_vmem [thread:$0]  %s128, 128, %s130, %s118
        $region20: #{tpu_custom_call.1} parent=15 // pred_fallthru
          _
        // Predicated region
        $region21: #{tpu_custom_call.1} parent=15 // pred_check
          %p133 = pneg %p63
        $region22: #{tpu_custom_call.1} parent=15 // pred_check_branch
          %135 = sbr.rel (%p133) target = $region24
        $region23: #{tpu_custom_call.1} parent=15 // pred_region
          %s136 = sand.u32 %s53, 1
          %s137 = scalar_lea.sflag [#allocation6], %s136
          %s138 = sand.u32 %s53, 1
          %s139 = smul.addr %s138, 4
          %s140 = scalar_lea.vmem [#allocation5], %s139
          %142 = vsyncadd %s137, 0
          %s143 = smul.addr %s17, 4
          %s144 = scalar_lea.hbm %s1, %s143
          %s146 = sshll.u32 %s144, 4
          %s147 = int_to_ptr.hbm [resolvable:$true] %s146
          %s148 = sshll.u32 %s140, 4
          %s149 = int_to_ptr.vmem [resolvable:$true] %s148
          %151 = dma.hbm_to_vmem [thread:$0]  %s147, 64, %s149, %s137
        $region24: #{tpu_custom_call.1} parent=15 // pred_fallthru
          _
      $region16: #{tpu_custom_call.1} parent=5 // pred_fallthru
        _
      %p152 = scmp.le.s32.totalorder 1, %s17
      %p153 = scmp.lt.s32.totalorder %s17, 3
      %p154 = pnand %p152, %p153
      %p155 = pneg %p154
      // Predicated region
      $region25: #{tpu_custom_call.1} parent=5 // pred_check
        _
      $region26: #{tpu_custom_call.1} parent=5 // pred_check_branch
        %157 = sbr.rel (%p154) target = $region28
      $region27: #{tpu_custom_call.1} parent=5 // pred_region
        %s158 = ssub.s32 %s17, 1
        %s159 = sand.u32 %s30, 1
        %s160 = scalar_lea.sflag [#allocation3], %s159
        %s161 = sand.u32 %s30, 1
        %s162 = smul.addr %s161, 8
        %s163 = scalar_lea.vmem [#allocation2], %s162
        // Predicated region
        $region29: #{tpu_custom_call.1} parent=27 // pred_check
          %p164 = pneg %p43
        $region30: #{tpu_custom_call.1} parent=27 // pred_check_branch
          %166 = sbr.rel (%p164) target = $region32
        $region31: #{tpu_custom_call.1} parent=27 // pred_region
          %168 = dma.done %s160, 128
        $region32: #{tpu_custom_call.1} parent=27 // pred_fallthru
          _
        %s169 = sand.u32 %s56, 1
        %s170 = scalar_lea.sflag [#allocation6], %s169
        %s171 = sand.u32 %s56, 1
        %s172 = smul.addr %s171, 4
        %s173 = scalar_lea.vmem [#allocation5], %s172
        // Predicated region
        $region33: #{tpu_custom_call.1} parent=27 // pred_check
          %p174 = pneg %p69
        $region34: #{tpu_custom_call.1} parent=27 // pred_check_branch
          %176 = sbr.rel (%p174) target = $region36
        $region35: #{tpu_custom_call.1} parent=27 // pred_region
          %178 = dma.done %s170, 64
        $region36: #{tpu_custom_call.1} parent=27 // pred_fallthru
          _
        %s179 = sand.u32 %s30, 1
        %s180 = scalar_lea.sflag [#allocation3], %s179
        %s181 = sand.u32 %s30, 1
        %s182 = smul.addr %s181, 8
        %s183 = scalar_lea.vmem [#allocation2], %s182
        %p184 = pneg %p43
        %p185 = pneg %p40
        %s186 = sand.u32 %s56, 1
        %s187 = scalar_lea.sflag [#allocation6], %s186
        %s188 = sand.u32 %s56, 1
        %s189 = smul.addr %s188, 4
        %s190 = scalar_lea.vmem [#allocation5], %s189
        %p191 = pneg %p69
        %p192 = pneg %p66
        %p193 = pneg %p95
        %p194 = pneg %p92
        %s195 = sand.u32 %s82, 1
        %s196 = scalar_lea.sflag [#allocation4], %s195
        %s197 = sand.u32 %s82, 1
        %s198 = smul.addr %s197, 8
        %s199 = scalar_lea.vmem [#allocation7], %s198
        %v200 = vld [vmem:[%s163] sm:$0xff]
        %v201 = vld [vmem:[%s173] sm:$0xf]
        %v202 = vunpack.c.l.bf16 %v201
        %v203 = vmax.f32 %v200, 0.0
        %v204 = vmul.f32 %v200, %v202
        %v205 = vsub.f32 %v203, %v204
        %v206 = vand.u32 2147483647, %v200
        %v207 = vsub.f32 0.0, %v206
        %v208 = vmul.f32 %v207, 1.442695
        %v209 = vpow.pop %v208
        %v210 = vadd.f32 %v209, 1.0
        %v211 = vlog2.pop %v210
        %v212 = vmul.f32 %v211, 0.6931472
        %v213 = vmul.f32 -0.5, %v209
        %v214 = vadd.f32 %v213, 1.0
        %v215 = vmul.f32 %v214, %v209
        %v216 = vand.u32 2147483647, %v209
        %vm217 = vcmp.lt.f32.partialorder %v216, 0.0004427343
        %v218 = vsel %vm217, %v215, %v212
        %v219 = vadd.f32 %v205, %v218
        %v220 = vadd.f32 %v219, 0.0
        %221 = vst [vmem:[%s199] sm:$0xff] %v220
        %s222 = sand.u32 %s82, 1
        %s223 = scalar_lea.sflag [#allocation4], %s222
        %s224 = sand.u32 %s82, 1
        %s225 = smul.addr %s224, 8
        %s226 = scalar_lea.vmem [#allocation7], %s225
        // Predicated region
        $region37: #{tpu_custom_call.1} parent=27 // pred_check
          %p227 = pneg %p92
        $region38: #{tpu_custom_call.1} parent=27 // pred_check_branch
          %229 = sbr.rel (%p227) target = $region40
        $region39: #{tpu_custom_call.1} parent=27 // pred_region
          %231 = vsyncadd %s223, 0
          %s232 = smul.addr %s22, 8
          %s233 = scalar_lea.hbm %s2, %s232
          %s235 = sshll.u32 %s226, 4
          %s236 = int_to_ptr.vmem [resolvable:$true] %s235
          %s237 = sshll.u32 %s233, 4
          %s238 = int_to_ptr.hbm [resolvable:$true] %s237
          %240 = dma.vmem_to_hbm [thread:$0]  %s236, 128, %s238, %s223
        $region40: #{tpu_custom_call.1} parent=27 // pred_fallthru
          _
      $region28: #{tpu_custom_call.1} parent=5 // pred_fallthru
        _
      %p241 = scmp.le.s32.totalorder 2, %s17
      // Predicated region
      $region41: #{tpu_custom_call.1} parent=5 // pred_check
        %p242 = pneg %p241
      $region42: #{tpu_custom_call.1} parent=5 // pred_check_branch
        %244 = sbr.rel (%p242) target = $region44
      $region43: #{tpu_custom_call.1} parent=5 // pred_region
        %s245 = ssub.s32 %s17, 2
        // Predicated region
        $region45: #{tpu_custom_call.1} parent=43 // pred_check
          %p246 = pneg %p98
        $region46: #{tpu_custom_call.1} parent=43 // pred_check_branch
          %248 = sbr.rel (%p246) target = $region48
        $region47: #{tpu_custom_call.1} parent=43 // pred_region
          %s249 = sand.u32 %s83, 1
          %s250 = scalar_lea.sflag [#allocation4], %s249
          %s251 = sand.u32 %s83, 1
          %s252 = smul.addr %s251, 8
          %s253 = scalar_lea.vmem [#allocation7], %s252
          %255 = dma.done %s250, 128
        $region48: #{tpu_custom_call.1} parent=43 // pred_fallthru
          _
      $region44: #{tpu_custom_call.1} parent=5 // pred_fallthru
        _
    $region6: #{tpu_custom_call.1} parent=1 // loop_footer
      %s21 = sadd.s32 1, %s17
    $region7: #{tpu_custom_call.1} parent=1 // loop_footer_branch
      %16 = sbr.rel target = $region3
    $region8: #{tpu_custom_call.1} parent=1 // loop_exit
      _
    %256 = vsyncpa [#allocation3], 1
    %s257 = scalar_lea.sflag [#allocation3], 1
    %258 = vsyncpa %s257, 1
    %259 = vsyncpa [#allocation6], 1
    %s260 = scalar_lea.sflag [#allocation6], 1
    %261 = vsyncpa %s260, 1
    %262 = vsyncpa [#allocation4], 1
    %s263 = scalar_lea.sflag [#allocation4], 1
    %264 = vsyncpa %s263, 1

</llo_original>
